<compile_context>
chip_gen: v5e
topology: v5e:2x2
jax: 0.10.0
libtpu: 0.0.40
codegen_flags: <defaults>
</compile_context>

<pallas_src>
import functools

import jax
import jax.numpy as jnp
import numpy as np
from jax.experimental import pallas as pl
from jax.experimental.pallas import tpu as pltpu


def _temporal_kernel(x_ref, w_ref, o_ref, *, G, precision):
    # x_ref: (tm, K) rows of raw x (K = C*Win)
    # w_ref: (K, 3*G) fused Toeplitz weights [conv_in | glu_a | glu_b]
    # o_ref: (tm, G)  with G = Wout*OC
    res = jnp.dot(x_ref[...], w_ref[...],
                  preferred_element_type=jnp.float32,
                  precision=precision)
    x_in = res[:, 0:G]
    g_a = res[:, G:2 * G]
    g_b = res[:, 2 * G:3 * G]
    gate = 1.0 / (1.0 + jnp.exp(-g_b))           # exact sigmoid (exp on EUP)
    o_ref[...] = ((g_a + x_in) * gate).astype(o_ref.dtype)


def _toeplitz(w, Win, Wout, dtype):
    """Conv weight (OCw, C, 1, KW) -> matmul weight (C*Win, Wout*OCw).

    (x_rows @ W)[r, w*OCw + oc] == conv2d(x, w)[n, oc, h, w]   with r = n*H + h
    and x_rows[r, c*Win + win] == x[n, c, h, win].
    """
    OCw, C, _, KW = w.shape
    wt = jnp.transpose(w[:, :, 0, :], (1, 2, 0)).astype(dtype)   # (C, KW, OCw)
    big = jnp.zeros((C, Win, Wout, OCw), dtype)
    for ww in range(Wout):                      # trace-time loop, Wout is small
        big = big.at[:, ww:ww + KW, ww, :].set(wt)
    return big.reshape(C * Win, Wout * OCw)


def temporal_layer_forward(x, wt_input, wt_glu, out_dim, *, tm=1024,
                           input_dtype=None):
    """x: (N, 7, H, in_dim) NCHW -> (N, 7, H, out_dim)."""
    N, C, H, Win = x.shape
    OC, IC, KH, KW = wt_input.shape             # (7, 7, 1, in_dim - out_dim + 1)
    assert C == IC and KH == 1 and OC == 7
    assert wt_glu.shape == (2 * OC, C, 1, KW)
    Wout = Win - KW + 1
    assert Wout == out_dim

    in_dt = jnp.dtype(input_dtype) if input_dtype is not None else x.dtype
    K = C * Win                                 # contraction length
    G = Wout * OC                               # output columns per group

    # Fused Toeplitz weight, column groups: [conv_input | glu_a | glu_b].
    w_fused = jnp.concatenate(
        [_toeplitz(wt_input,      Win, Wout, in_dt),
         _toeplitz(wt_glu[0:OC],  Win, Wout, in_dt),
         _toeplitz(wt_glu[OC:],   Win, Wout, in_dt)], axis=1)     # (K, 3*G)

    # Raw x -> (N*H, C*Win) rows: a single 1x-sized pass, no im2col inflation.
    x_rows = jnp.transpose(x, (0, 2, 1, 3)).reshape(N * H, K).astype(in_dt)

    M = N * H
    tm_eff = min(tm, pl.cdiv(M, 8) * 8)         # clamp tile for tiny inputs
    Mp = pl.cdiv(M, tm_eff) * tm_eff
    if Mp != M:
        x_rows = jnp.pad(x_rows, ((0, Mp - M), (0, 0)))  # only rows; <= tm-1 extra

    # f32 inputs: force exact f32 MXU passes.  bf16 inputs: native bf16 MXU.
    precision = (jax.lax.Precision.HIGHEST
                 if in_dt == jnp.dtype(jnp.float32) else None)

    cost = pl.CostEstimate(
        flops=2 * Mp * K * 3 * G,
        transcendentals=Mp * G,
        bytes_accessed=(Mp * K * x_rows.dtype.itemsize
                        + Mp * G * 4
                        + K * 3 * G * w_fused.dtype.itemsize))

    out_flat = pl.pallas_call(
        functools.partial(_temporal_kernel, G=G, precision=precision),
        out_shape=jax.ShapeDtypeStruct((Mp, G), jnp.float32),
        grid_spec=pltpu.PrefetchScalarGridSpec(
            num_scalar_prefetch=0,
            grid=(Mp // tm_eff,),
            in_specs=[
                pl.BlockSpec((tm_eff, K), lambda i: (i, 0)),   # x row tile
                pl.BlockSpec((K, 3 * G), lambda i: (0, 0)),    # fused weights (resident)
            ],
            out_specs=pl.BlockSpec((tm_eff, G), lambda i: (i, 0)),
        ),
        compiler_params=pltpu.CompilerParams(
            dimension_semantics=("parallel",)),
        cost_estimate=cost,
    )(x_rows, w_fused)

    out = out_flat[:M].reshape(N, H, Wout, OC)   # (N, H, Wout, 7)
    return jnp.transpose(out, (0, 3, 1, 2)).astype(x.dtype)  # NCHW


def _reference_forward(x, wt_input, wt_glu):
    """Pure-JAX reference replicating the PyTorch forward exactly (f32-exact)."""
    dn = ("NCHW", "OIHW", "NCHW")
    hp = jax.lax.Precision.HIGHEST
    x_input = jax.lax.conv_general_dilated(x, wt_input, (1, 1), "VALID",
                                           dimension_numbers=dn, precision=hp)
    x_glu = jax.lax.conv_general_dilated(x, wt_glu, (1, 1), "VALID",
                                         dimension_numbers=dn, precision=hp)
    return (x_glu[:, 0:7] + x_input) * jax.nn.sigmoid(x_glu[:, 7:14])


if __name__ == "__main__":
    # Small shapes consistent with the module: C=7 is fixed by the weights,
    # W = in_dim, kernel width kW = in_dim - out_dim + 1.
    N, H = 2, 5
    in_dim, out_dim = 16, 8
    kW = in_dim - out_dim + 1  # 9

    key = jax.random.PRNGKey(0)
    k_wi, k_wg, k_x = jax.random.split(key, 3)

    # Deterministic xavier_uniform-style init (same bounds as nn.init.xavier_uniform_).
    fan_in = 7 * 1 * kW
    b_in = float(np.sqrt(6.0 / (fan_in + 7 * kW)))
    b_glu = float(np.sqrt(6.0 / (fan_in + 14 * kW)))
    wt_input = jax.random.uniform(k_wi, (7, 7, 1, kW), jnp.float32, -b_in, b_in)
    wt_glu = jax.random.uniform(k_wg, (14, 7, 1, kW), jnp.float32, -b_glu, b_glu)
    # TODO(synk): B_input / B_glu are declared in __init__ but never used in forward(); omitted.

    x = jax.random.normal(k_x, (N, 7, H, in_dim), jnp.float32)

    # f32 path (exact sigmoid + HIGHEST-precision matmul)
    y = temporal_layer_forward(x, wt_input, wt_glu, out_dim)
    y = jax.block_until_ready(y)

    y_ref = _reference_forward(x, wt_input, wt_glu)
    np.testing.assert_allclose(np.asarray(y), np.asarray(y_ref),
                               rtol=2e-3, atol=2e-3)
    assert y.shape == (N, 7, H, out_dim)

    # bf16 input path (halves HBM reads on v6e/v7x); accumulation & GLU stay f32.
    y_bf16 = temporal_layer_forward(x, wt_input, wt_glu, out_dim,
                                    input_dtype=jnp.bfloat16)
    y_bf16 = jax.block_until_ready(y_bf16)
    np.testing.assert_allclose(np.asarray(y_bf16), np.asarray(y_ref),
                               rtol=1e-1, atol=1e-1)

    print("KERNEL_OK")
</pallas_src>

<mosaic_0001>
module attributes {stable_mosaic.version = 11 : i64} {
  func.func @_temporal_kernel(%arg0: i32, %arg1: memref<16x112xf32, #tpu.memory_space<vmem>>, %arg2: memref<112x168xf32, #tpu.memory_space<vmem>>, %arg3: memref<16x56xf32, #tpu.memory_space<vmem>>) attributes {dimension_semantics = [#tpu.dimension_semantics<parallel>], iteration_bounds = array<i64: 1>, scalar_prefetch = 0 : i64, scratch_operands = 0 : i64, tpu.core_type = #tpu.core_type<tc>, window_params = [{transform_indices = @transform_0, window_bounds = array<i64: 16, 112>}, {pipeline_mode = #tpu.pipeline_mode<synchronous>, transform_indices = @transform_1, window_bounds = array<i64: 112, 168>}, {transform_indices = @transform_2, window_bounds = array<i64: 16, 56>}]} {
    %c0 = arith.constant 0 : index
    %c0_0 = arith.constant 0 : index
    %0 = vector.load %arg1[%c0, %c0_0] : memref<16x112xf32, #tpu.memory_space<vmem>>, vector<16x112xf32>
    %c0_1 = arith.constant 0 : index
    %c0_2 = arith.constant 0 : index
    %1 = vector.load %arg2[%c0_1, %c0_2] : memref<112x168xf32, #tpu.memory_space<vmem>>, vector<112x168xf32>
    %cst = arith.constant dense<0.000000e+00> : vector<16x168xf32>
    %2 = tpu.matmul %0, %1, %cst {dimension_numbers = #tpu.dot_dimension_numbers<[1], [0], [0], [1], [0, 0, 1, 1], [], []>, precision = #tpu.contract_precision<fp32>} : vector<16x112xf32>, vector<112x168xf32>, vector<16x168xf32> -> vector<16x168xf32>
    %3 = vector.extract_strided_slice %2 {offsets = [0, 0], sizes = [16, 56], strides = [1, 1]} : vector<16x168xf32> to vector<16x56xf32>
    %4 = vector.extract_strided_slice %2 {offsets = [0, 56], sizes = [16, 56], strides = [1, 1]} : vector<16x168xf32> to vector<16x56xf32>
    %5 = vector.extract_strided_slice %2 {offsets = [0, 112], sizes = [16, 56], strides = [1, 1]} : vector<16x168xf32> to vector<16x56xf32>
    %cst_3 = arith.constant 0.000000e+00 : f32
    %6 = vector.broadcast %cst_3 : f32 to vector<16x56xf32>
    %7 = arith.subf %6, %5 : vector<16x56xf32>
    %8 = math.exp %7 : vector<16x56xf32>
    %cst_4 = arith.constant 1.000000e+00 : f32
    %9 = vector.broadcast %cst_4 : f32 to vector<16x56xf32>
    %10 = arith.addf %9, %8 : vector<16x56xf32>
    %cst_5 = arith.constant 1.000000e+00 : f32
    %11 = vector.broadcast %cst_5 : f32 to vector<16x56xf32>
    %12 = arith.divf %11, %10 : vector<16x56xf32>
    %13 = arith.addf %4, %3 : vector<16x56xf32>
    %14 = arith.mulf %13, %12 : vector<16x56xf32>
    %c0_6 = arith.constant 0 : index
    %c0_7 = arith.constant 0 : index
    %15 = vector.load %arg3[%c0_6, %c0_7] : memref<16x56xf32, #tpu.memory_space<vmem>>, vector<16x56xf32>
    tpu.vector_store %arg3[%c0_6, %c0_7], %14 {strides = array<i32>} : memref<16x56xf32, #tpu.memory_space<vmem>>, vector<16x56xf32>,
    return
  }
  func.func @transform_0(%arg0: i32) -> (i32, i32) {
    %c0_i32 = arith.constant 0 : i32
    %c0_i32_0 = arith.constant 0 : i32
    return %arg0, %c0_i32 : i32, i32
  }
  func.func @transform_1(%arg0: i32) -> (i32, i32) {
    %c0_i32 = arith.constant 0 : i32
    %c0_i32_0 = arith.constant 0 : i32
    %c0_i32_1 = arith.constant 0 : i32
    return %c0_i32, %c0_i32_0 : i32, i32
  }
  func.func @transform_2(%arg0: i32) -> (i32, i32) {
    %c0_i32 = arith.constant 0 : i32
    %c0_i32_0 = arith.constant 0 : i32
    return %arg0, %c0_i32 : i32, i32
  }
}

</mosaic_0001>

<llo_original>
// kernel: tpu_custom_call.1
$region0: #{tpu_custom_call.1}
  #allocation0 [shape = 'u32[]', space=smem, size = 0x4, offset = 0x4, fixed_abs, tag = 'smem constant byte address 0x4 - core index']
  #allocation1 [shape = 'u32[72,128]{1,0:T(1,128)}', space=vmem, size = 0x9000, scoped, tag = 'internal scratch']
  %s0 = inlined_call_operand.vmem [shape: f32[16,112], index: 0, kind: input, shape index: {}]
  %s1 = inlined_call_operand.vmem [shape: f32[112,168], index: 1, kind: input, shape index: {}]
  %s2 = inlined_call_operand.hbm [shape: f32[16,56], index: 2, kind: output, shape index: {}]
  %s3 = sld [smem:[#allocation0]]
  $region18: #{tpu_custom_call.1} parent=0
    _
  %s5 = ssub.s32 1, %s3
  %s6 = scalar_select 0, %s5, %s3
  $region1: #{tpu_custom_call.1} parent=0
    #allocation2 [shape = 'u8[8192]{0}', space=vmem, size = 0x2000, scoped, tag = 'output window, operand 0, single buffered']
    #allocation3 [shape = 's32[1]{0}', space=sflag, size = 0x4, scoped, tag = 'scoped memory for tpu_custom_call.1']
    %7 = vsyncpa [#allocation3], 0
    // Predicated region
    $region2: #{tpu_custom_call.1} parent=1 // pred_check
      _
    $region3: #{tpu_custom_call.1} parent=1 // pred_check_branch
      %9 = sbr.rel (0) target = $region5
    $region4: #{tpu_custom_call.1} parent=1 // pred_region
      _
    $region5: #{tpu_custom_call.1} parent=1 // pred_fallthru
      _
    // Predicated region
    $region6: #{tpu_custom_call.1} parent=1 // pred_check
      _
    $region7: #{tpu_custom_call.1} parent=1 // pred_check_branch
      %11 = sbr.rel (0) target = $region9
    $region8: #{tpu_custom_call.1} parent=1 // pred_region
      _
    $region9: #{tpu_custom_call.1} parent=1 // pred_fallthru
      _
    %v12 = vld [vmem:[%s0] sm:$0xff]
    %v13 = vld [vmem:[%s0 + $0x8] sm:$0xff]
    %v14 = vld [vmem:[%s1] sm:$0xff]
    %v15 = vld [vmem:[%s1 + $0x8] sm:$0xff]
    %v16 = vld [vmem:[%s1 + $0x10] sm:$0xff]
    %v17 = vld [vmem:[%s1 + $0x18] sm:$0xff]
    %v18 = vld [vmem:[%s1 + $0x20] sm:$0xff]
    %v19 = vld [vmem:[%s1 + $0x28] sm:$0xff]
    %v20 = vld [vmem:[%s1 + $0x30] sm:$0xff]
    %v21 = vld [vmem:[%s1 + $0x38] sm:$0xff]
    %v22 = vld [vmem:[%s1 + $0x40] sm:$0xff]
    %v23 = vld [vmem:[%s1 + $0x48] sm:$0xff]
    %v24 = vld [vmem:[%s1 + $0x50] sm:$0xff]
    %v25 = vld [vmem:[%s1 + $0x58] sm:$0xff]
    %v26 = vld [vmem:[%s1 + $0x60] sm:$0xff]
    %v27 = vld [vmem:[%s1 + $0x68] sm:$0xff]
    %v28 = vld [vmem:[%s1 + $0x70] sm:$0xff]
    %v29 = vld [vmem:[%s1 + $0x78] sm:$0xff]
    %v30 = vld [vmem:[%s1 + $0x80] sm:$0xff]
    %v31 = vld [vmem:[%s1 + $0x88] sm:$0xff]
    %v32 = vld [vmem:[%s1 + $0x90] sm:$0xff]
    %v33 = vld [vmem:[%s1 + $0x98] sm:$0xff]
    %v34 = vld [vmem:[%s1 + $0xa0] sm:$0xff]
    %v35 = vld [vmem:[%s1 + $0xa8] sm:$0xff]
    %v36 = vld [vmem:[%s1 + $0xb0] sm:$0xff]
    %v37 = vld [vmem:[%s1 + $0xb8] sm:$0xff]
    %v38 = vld [vmem:[%s1 + $0xc0] sm:$0xff]
    %v39 = vld [vmem:[%s1 + $0xc8] sm:$0xff]
    %v40 = vld [vmem:[%s1 + $0xd0] sm:$0xff]
    %v41 = vld [vmem:[%s1 + $0xd8] sm:$0xff]
    %vm42 = vcmask 916480
    %v44 = vsel %vm42, %v12, 0
    %v47 = vsel %vm42, %v13, 0
    %49 = vmatpush.msra.mxu0 0.0
    %50 = vmatpush.msra.mxu0 0.0
    %v51 = vand.u32 %v40, 4294901760
    %52 = vmatpush.msra.mxu0 %v51
    %v53 = vand.u32 %v38, 4294901760
    %54 = vmatpush.msra.mxu0 %v53
    %v55 = vand.u32 %v36, 4294901760
    %56 = vmatpush.msra.mxu0 %v55
    %v57 = vand.u32 %v34, 4294901760
    %58 = vmatpush.msra.mxu0 %v57
    %v59 = vand.u32 %v32, 4294901760
    %60 = vmatpush.msra.mxu0 %v59
    %v61 = vand.u32 %v30, 4294901760
    %62 = vmatpush.msra.mxu0 %v61
    %v63 = vand.u32 %v28, 4294901760
    %64 = vmatpush.msra.mxu0 %v63
    %v65 = vand.u32 %v26, 4294901760
    %66 = vmatpush.msra.mxu0 %v65
    %v67 = vand.u32 %v24, 4294901760
    %68 = vmatpush.msra.mxu0 %v67
    %v69 = vand.u32 %v22, 4294901760
    %70 = vmatpush.msra.mxu0 %v69
    %v71 = vand.u32 %v20, 4294901760
    %72 = vmatpush.msra.mxu0 %v71
    %v73 = vand.u32 %v18, 4294901760
    %74 = vmatpush.msra.mxu0 %v73
    %v75 = vand.u32 %v16, 4294901760
    %76 = vmatpush.msra.mxu0 %v75
    %v77 = vand.u32 %v14, 4294901760
    %78 = vmatpush.msra.mxu0 %v77
    %v79 = vand.u32 %v44, 4294901760
    %v80 = vsub.f32 %v44, %v79
    %v81 = vand.u32 %v80, 4294901760
    %v82 = vsub.f32 %v80, %v81
    %v83 = vand.u32 %v82, 4294901760
    %84 = vmatmul.f32.gmra.mxu0 %v83
    %v85 = vpop.f32.mrf.mxu0
    %v86 = vadd.f32 0.0, %v85
    %v87 = vand.u32 %v47, 4294901760
    %v88 = vsub.f32 %v47, %v87
    %v89 = vand.u32 %v88, 4294901760
    %v90 = vsub.f32 %v88, %v89
    %v91 = vand.u32 %v90, 4294901760
    %92 = vmatmul.f32.gmra.mxu0 %v91
    %v93 = vpop.f32.mrf.mxu0
    %v94 = vadd.f32 0.0, %v93
    %95 = vdwg.mxu0
    %96 = vmatpush.msra.mxu0 0.0
    %97 = vmatpush.msra.mxu0 0.0
    %v98 = vand.u32 %v40, 4294901760
    %v99 = vsub.f32 %v40, %v98
    %v100 = vand.u32 %v99, 4294901760
    %v101 = vsub.f32 %v99, %v100
    %v102 = vand.u32 %v101, 4294901760
    %103 = vmatpush.msra.mxu0 %v102
    %v104 = vand.u32 %v38, 4294901760
    %v105 = vsub.f32 %v38, %v104
    %v106 = vand.u32 %v105, 4294901760
    %v107 = vsub.f32 %v105, %v106
    %v108 = vand.u32 %v107, 4294901760
    %109 = vmatpush.msra.mxu0 %v108
    %v110 = vand.u32 %v36, 4294901760
    %v111 = vsub.f32 %v36, %v110
    %v112 = vand.u32 %v111, 4294901760
    %v113 = vsub.f32 %v111, %v112
    %v114 = vand.u32 %v113, 4294901760
    %115 = vmatpush.msra.mxu0 %v114
    %v116 = vand.u32 %v34, 4294901760
    %v117 = vsub.f32 %v34, %v116
    %v118 = vand.u32 %v117, 4294901760
    %v119 = vsub.f32 %v117, %v118
    %v120 = vand.u32 %v119, 4294901760
    %121 = vmatpush.msra.mxu0 %v120
    %v122 = vand.u32 %v32, 4294901760
    %v123 = vsub.f32 %v32, %v122
    %v124 = vand.u32 %v123, 4294901760
    %v125 = vsub.f32 %v123, %v124
    %v126 = vand.u32 %v125, 4294901760
    %127 = vmatpush.msra.mxu0 %v126
    %v128 = vand.u32 %v30, 4294901760
    %v129 = vsub.f32 %v30, %v128
    %v130 = vand.u32 %v129, 4294901760
    %v131 = vsub.f32 %v129, %v130
    %v132 = vand.u32 %v131, 4294901760
    %133 = vmatpush.msra.mxu0 %v132
    %v134 = vand.u32 %v28, 4294901760
    %v135 = vsub.f32 %v28, %v134
    %v136 = vand.u32 %v135, 4294901760
    %v137 = vsub.f32 %v135, %v136
    %v138 = vand.u32 %v137, 4294901760
    %139 = vmatpush.msra.mxu0 %v138
    %v140 = vand.u32 %v26, 4294901760
    %v141 = vsub.f32 %v26, %v140
    %v142 = vand.u32 %v141, 4294901760
    %v143 = vsub.f32 %v141, %v142
    %v144 = vand.u32 %v143, 4294901760
    %145 = vmatpush.msra.mxu0 %v144
    %v146 = vand.u32 %v24, 4294901760
    %v147 = vsub.f32 %v24, %v146
    %v148 = vand.u32 %v147, 4294901760
    %v149 = vsub.f32 %v147, %v148
    %v150 = vand.u32 %v149, 4294901760
    %151 = vmatpush.msra.mxu0 %v150
    %v152 = vand.u32 %v22, 4294901760
    %v153 = vsub.f32 %v22, %v152
    %v154 = vand.u32 %v153, 4294901760
    %v155 = vsub.f32 %v153, %v154
    %v156 = vand.u32 %v155, 4294901760
    %157 = vmatpush.msra.mxu0 %v156
    %v158 = vand.u32 %v20, 4294901760
    %v159 = vsub.f32 %v20, %v158
    %v160 = vand.u32 %v159, 4294901760
    %v161 = vsub.f32 %v159, %v160
    %v162 = vand.u32 %v161, 4294901760
    %163 = vmatpush.msra.mxu0 %v162
    %v164 = vand.u32 %v18, 4294901760
    %v165 = vsub.f32 %v18, %v164
    %v166 = vand.u32 %v165, 4294901760
    %v167 = vsub.f32 %v165, %v166
    %v168 = vand.u32 %v167, 4294901760
    %169 = vmatpush.msra.mxu0 %v168
    %v170 = vand.u32 %v16, 4294901760
    %v171 = vsub.f32 %v16, %v170
    %v172 = vand.u32 %v171, 4294901760
    %v173 = vsub.f32 %v171, %v172
    %v174 = vand.u32 %v173, 4294901760
    %175 = vmatpush.msra.mxu0 %v174
    %v176 = vand.u32 %v14, 4294901760
    %v177 = vsub.f32 %v14, %v176
    %v178 = vand.u32 %v177, 4294901760
    %v179 = vsub.f32 %v177, %v178
    %v180 = vand.u32 %v179, 4294901760
    %181 = vmatpush.msra.mxu0 %v180
    %v182 = vand.u32 %v44, 4294901760
    %183 = vmatmul.f32.gmra.mxu0 %v182
    %v184 = vpop.f32.mrf.mxu0
    %v185 = vadd.f32 %v86, %v184
    %v186 = vand.u32 %v47, 4294901760
    %187 = vmatmul.f32.gmra.mxu0 %v186
    %v188 = vpop.f32.mrf.mxu0
    %v189 = vadd.f32 %v94, %v188
    %190 = vdwg.mxu0
    %191 = vmatpush.msra.mxu0 0.0
    %192 = vmatpush.msra.mxu0 0.0
    %v193 = vand.u32 %v40, 4294901760
    %v194 = vsub.f32 %v40, %v193
    %195 = vmatpush.msra.mxu0 %v194
    %v196 = vand.u32 %v38, 4294901760
    %v197 = vsub.f32 %v38, %v196
    %198 = vmatpush.msra.mxu0 %v197
    %v199 = vand.u32 %v36, 4294901760
    %v200 = vsub.f32 %v36, %v199
    %201 = vmatpush.msra.mxu0 %v200
    %v202 = vand.u32 %v34, 4294901760
    %v203 = vsub.f32 %v34, %v202
    %204 = vmatpush.msra.mxu0 %v203
    %v205 = vand.u32 %v32, 4294901760
    %v206 = vsub.f32 %v32, %v205
    %207 = vmatpush.msra.mxu0 %v206
    %v208 = vand.u32 %v30, 4294901760
    %v209 = vsub.f32 %v30, %v208
    %210 = vmatpush.msra.mxu0 %v209
    %v211 = vand.u32 %v28, 4294901760
    %v212 = vsub.f32 %v28, %v211
    %213 = vmatpush.msra.mxu0 %v212
    %v214 = vand.u32 %v26, 4294901760
    %v215 = vsub.f32 %v26, %v214
    %216 = vmatpush.msra.mxu0 %v215
    %v217 = vand.u32 %v24, 4294901760
    %v218 = vsub.f32 %v24, %v217
    %219 = vmatpush.msra.mxu0 %v218
    %v220 = vand.u32 %v22, 4294901760
    %v221 = vsub.f32 %v22, %v220
    %222 = vmatpush.msra.mxu0 %v221
    %v223 = vand.u32 %v20, 4294901760
    %v224 = vsub.f32 %v20, %v223
    %225 = vmatpush.msra.mxu0 %v224
    %v226 = vand.u32 %v18, 4294901760
    %v227 = vsub.f32 %v18, %v226
    %228 = vmatpush.msra.mxu0 %v227
    %v229 = vand.u32 %v16, 4294901760
    %v230 = vsub.f32 %v16, %v229
    %231 = vmatpush.msra.mxu0 %v230
    %v232 = vand.u32 %v14, 4294901760
    %v233 = vsub.f32 %v14, %v232
    %234 = vmatpush.msra.mxu0 %v233
    %v235 = vand.u32 %v44, 4294901760
    %v236 = vsub.f32 %v44, %v235
    %237 = vmatmul.f32.gmra.mxu0 %v236
    %v238 = vpop.f32.mrf.mxu0
    %v239 = vadd.f32 %v185, %v238
    %v240 = vand.u32 %v47, 4294901760
    %v241 = vsub.f32 %v47, %v240
    %242 = vmatmul.f32.gmra.mxu0 %v241
    %v243 = vpop.f32.mrf.mxu0
    %v244 = vadd.f32 %v189, %v243
    %245 = vdwg.mxu0
    %246 = vmatpush.msra.mxu0 0.0
    %247 = vmatpush.msra.mxu0 0.0
    %v248 = vand.u32 %v40, 4294901760
    %249 = vmatpush.msra.mxu0 %v248
    %v250 = vand.u32 %v38, 4294901760
    %251 = vmatpush.msra.mxu0 %v250
    %v252 = vand.u32 %v36, 4294901760
    %253 = vmatpush.msra.mxu0 %v252
    %v254 = vand.u32 %v34, 4294901760
    %255 = vmatpush.msra.mxu0 %v254
    %v256 = vand.u32 %v32, 4294901760
    %257 = vmatpush.msra.mxu0 %v256
    %v258 = vand.u32 %v30, 4294901760
    %259 = vmatpush.msra.mxu0 %v258
    %v260 = vand.u32 %v28, 4294901760
    %261 = vmatpush.msra.mxu0 %v260
    %v262 = vand.u32 %v26, 4294901760
    %263 = vmatpush.msra.mxu0 %v262
    %v264 = vand.u32 %v24, 4294901760
    %265 = vmatpush.msra.mxu0 %v264
    %v266 = vand.u32 %v22, 4294901760
    %267 = vmatpush.msra.mxu0 %v266
    %v268 = vand.u32 %v20, 4294901760
    %269 = vmatpush.msra.mxu0 %v268
    %v270 = vand.u32 %v18, 4294901760
    %271 = vmatpush.msra.mxu0 %v270
    %v272 = vand.u32 %v16, 4294901760
    %273 = vmatpush.msra.mxu0 %v272
    %v274 = vand.u32 %v14, 4294901760
    %275 = vmatpush.msra.mxu0 %v274
    %v276 = vand.u32 %v44, 4294901760
    %v277 = vsub.f32 %v44, %v276
    %v278 = vand.u32 %v277, 4294901760
    %279 = vmatmul.f32.gmra.mxu0 %v278
    %v280 = vpop.f32.mrf.mxu0
    %v281 = vadd.f32 %v239, %v280
    %v282 = vand.u32 %v47, 4294901760
    %v283 = vsub.f32 %v47, %v282
    %v284 = vand.u32 %v283, 4294901760
    %285 = vmatmul.f32.gmra.mxu0 %v284
    %v286 = vpop.f32.mrf.mxu0
    %v287 = vadd.f32 %v244, %v286
    %288 = vdwg.mxu0
    %289 = vmatpush.msra.mxu0 0.0
    %290 = vmatpush.msra.mxu0 0.0
    %v291 = vand.u32 %v40, 4294901760
    %v292 = vsub.f32 %v40, %v291
    %v293 = vand.u32 %v292, 4294901760
    %294 = vmatpush.msra.mxu0 %v293
    %v295 = vand.u32 %v38, 4294901760
    %v296 = vsub.f32 %v38, %v295
    %v297 = vand.u32 %v296, 4294901760
    %298 = vmatpush.msra.mxu0 %v297
    %v299 = vand.u32 %v36, 4294901760
    %v300 = vsub.f32 %v36, %v299
    %v301 = vand.u32 %v300, 4294901760
    %302 = vmatpush.msra.mxu0 %v301
    %v303 = vand.u32 %v34, 4294901760
    %v304 = vsub.f32 %v34, %v303
    %v305 = vand.u32 %v304, 4294901760
    %306 = vmatpush.msra.mxu0 %v305
    %v307 = vand.u32 %v32, 4294901760
    %v308 = vsub.f32 %v32, %v307
    %v309 = vand.u32 %v308, 4294901760
    %310 = vmatpush.msra.mxu0 %v309
    %v311 = vand.u32 %v30, 4294901760
    %v312 = vsub.f32 %v30, %v311
    %v313 = vand.u32 %v312, 4294901760
    %314 = vmatpush.msra.mxu0 %v313
    %v315 = vand.u32 %v28, 4294901760
    %v316 = vsub.f32 %v28, %v315
    %v317 = vand.u32 %v316, 4294901760
    %318 = vmatpush.msra.mxu0 %v317
    %v319 = vand.u32 %v26, 4294901760
    %v320 = vsub.f32 %v26, %v319
    %v321 = vand.u32 %v320, 4294901760
    %322 = vmatpush.msra.mxu0 %v321
    %v323 = vand.u32 %v24, 4294901760
    %v324 = vsub.f32 %v24, %v323
    %v325 = vand.u32 %v324, 4294901760
    %326 = vmatpush.msra.mxu0 %v325
    %v327 = vand.u32 %v22, 4294901760
    %v328 = vsub.f32 %v22, %v327
    %v329 = vand.u32 %v328, 4294901760
    %330 = vmatpush.msra.mxu0 %v329
    %v331 = vand.u32 %v20, 4294901760
    %v332 = vsub.f32 %v20, %v331
    %v333 = vand.u32 %v332, 4294901760
    %334 = vmatpush.msra.mxu0 %v333
    %v335 = vand.u32 %v18, 4294901760
    %v336 = vsub.f32 %v18, %v335
    %v337 = vand.u32 %v336, 4294901760
    %338 = vmatpush.msra.mxu0 %v337
    %v339 = vand.u32 %v16, 4294901760
    %v340 = vsub.f32 %v16, %v339
    %v341 = vand.u32 %v340, 4294901760
    %342 = vmatpush.msra.mxu0 %v341
    %v343 = vand.u32 %v14, 4294901760
    %v344 = vsub.f32 %v14, %v343
    %v345 = vand.u32 %v344, 4294901760
    %346 = vmatpush.msra.mxu0 %v345
    %v347 = vand.u32 %v44, 4294901760
    %348 = vmatmul.f32.gmra.mxu0 %v347
    %v349 = vpop.f32.mrf.mxu0
    %v350 = vadd.f32 %v281, %v349
    %v351 = vand.u32 %v47, 4294901760
    %352 = vmatmul.f32.gmra.mxu0 %v351
    %v353 = vpop.f32.mrf.mxu0
    %v354 = vadd.f32 %v287, %v353
    %355 = vdwg.mxu0
    %356 = vmatpush.msra.mxu0 0.0
    %357 = vmatpush.msra.mxu0 0.0
    %v358 = vand.u32 %v40, 4294901760
    %359 = vmatpush.msra.mxu0 %v358
    %v360 = vand.u32 %v38, 4294901760
    %361 = vmatpush.msra.mxu0 %v360
    %v362 = vand.u32 %v36, 4294901760
    %363 = vmatpush.msra.mxu0 %v362
    %v364 = vand.u32 %v34, 4294901760
    %365 = vmatpush.msra.mxu0 %v364
    %v366 = vand.u32 %v32, 4294901760
    %367 = vmatpush.msra.mxu0 %v366
    %v368 = vand.u32 %v30, 4294901760
    %369 = vmatpush.msra.mxu0 %v368
    %v370 = vand.u32 %v28, 4294901760
    %371 = vmatpush.msra.mxu0 %v370
    %v372 = vand.u32 %v26, 4294901760
    %373 = vmatpush.msra.mxu0 %v372
    %v374 = vand.u32 %v24, 4294901760
    %375 = vmatpush.msra.mxu0 %v374
    %v376 = vand.u32 %v22, 4294901760
    %377 = vmatpush.msra.mxu0 %v376
    %v378 = vand.u32 %v20, 4294901760
    %379 = vmatpush.msra.mxu0 %v378
    %v380 = vand.u32 %v18, 4294901760
    %381 = vmatpush.msra.mxu0 %v380
    %v382 = vand.u32 %v16, 4294901760
    %383 = vmatpush.msra.mxu0 %v382
    %v384 = vand.u32 %v14, 4294901760
    %385 = vmatpush.msra.mxu0 %v384
    %v386 = vand.u32 %v44, 4294901760
    %387 = vmatmul.f32.gmra.mxu0 %v386
    %v388 = vpop.f32.mrf.mxu0
    %v389 = vadd.f32 %v350, %v388
    %v390 = vand.u32 %v47, 4294901760
    %391 = vmatmul.f32.gmra.mxu0 %v390
    %v392 = vpop.f32.mrf.mxu0
    %v393 = vadd.f32 %v354, %v392
    %394 = vdwg.mxu0
    %395 = vmatpush.msra.mxu0 0.0
    %396 = vmatpush.msra.mxu0 0.0
    %v397 = vand.u32 %v41, 4294901760
    %398 = vmatpush.msra.mxu0 %v397
    %v399 = vand.u32 %v39, 4294901760
    %400 = vmatpush.msra.mxu0 %v399
    %v401 = vand.u32 %v37, 4294901760
    %402 = vmatpush.msra.mxu0 %v401
    %v403 = vand.u32 %v35, 4294901760
    %404 = vmatpush.msra.mxu0 %v403
    %v405 = vand.u32 %v33, 4294901760
    %406 = vmatpush.msra.mxu0 %v405
    %v407 = vand.u32 %v31, 4294901760
    %408 = vmatpush.msra.mxu0 %v407
    %v409 = vand.u32 %v29, 4294901760
    %410 = vmatpush.msra.mxu0 %v409
    %v411 = vand.u32 %v27, 4294901760
    %412 = vmatpush.msra.mxu0 %v411
    %v413 = vand.u32 %v25, 4294901760
    %414 = vmatpush.msra.mxu0 %v413
    %v415 = vand.u32 %v23, 4294901760
    %416 = vmatpush.msra.mxu0 %v415
    %v417 = vand.u32 %v21, 4294901760
    %418 = vmatpush.msra.mxu0 %v417
    %v419 = vand.u32 %v19, 4294901760
    %420 = vmatpush.msra.mxu0 %v419
    %v421 = vand.u32 %v17, 4294901760
    %422 = vmatpush.msra.mxu0 %v421
    %v423 = vand.u32 %v15, 4294901760
    %424 = vmatpush.msra.mxu0 %v423
    %v425 = vand.u32 %v44, 4294901760
    %v426 = vsub.f32 %v44, %v425
    %v427 = vand.u32 %v426, 4294901760
    %v428 = vsub.f32 %v426, %v427
    %v429 = vand.u32 %v428, 4294901760
    %430 = vmatmul.f32.gmra.mxu0 %v429
    %v431 = vpop.f32.mrf.mxu0
    %v432 = vadd.f32 0.0, %v431
    %v433 = vand.u32 %v47, 4294901760
    %v434 = vsub.f32 %v47, %v433
    %v435 = vand.u32 %v434, 4294901760
    %v436 = vsub.f32 %v434, %v435
    %v437 = vand.u32 %v436, 4294901760
    %438 = vmatmul.f32.gmra.mxu0 %v437
    %v439 = vpop.f32.mrf.mxu0
    %v440 = vadd.f32 0.0, %v439
    %441 = vdwg.mxu0
    %442 = vmatpush.msra.mxu0 0.0
    %443 = vmatpush.msra.mxu0 0.0
    %v444 = vand.u32 %v41, 4294901760
    %v445 = vsub.f32 %v41, %v444
    %v446 = vand.u32 %v445, 4294901760
    %v447 = vsub.f32 %v445, %v446
    %v448 = vand.u32 %v447, 4294901760
    %449 = vmatpush.msra.mxu0 %v448
    %v450 = vand.u32 %v39, 4294901760
    %v451 = vsub.f32 %v39, %v450
    %v452 = vand.u32 %v451, 4294901760
    %v453 = vsub.f32 %v451, %v452
    %v454 = vand.u32 %v453, 4294901760
    %455 = vmatpush.msra.mxu0 %v454
    %v456 = vand.u32 %v37, 4294901760
    %v457 = vsub.f32 %v37, %v456
    %v458 = vand.u32 %v457, 4294901760
    %v459 = vsub.f32 %v457, %v458
    %v460 = vand.u32 %v459, 4294901760
    %461 = vmatpush.msra.mxu0 %v460
    %v462 = vand.u32 %v35, 4294901760
    %v463 = vsub.f32 %v35, %v462
    %v464 = vand.u32 %v463, 4294901760
    %v465 = vsub.f32 %v463, %v464
    %v466 = vand.u32 %v465, 4294901760
    %467 = vmatpush.msra.mxu0 %v466
    %v468 = vand.u32 %v33, 4294901760
    %v469 = vsub.f32 %v33, %v468
    %v470 = vand.u32 %v469, 4294901760
    %v471 = vsub.f32 %v469, %v470
    %v472 = vand.u32 %v471, 4294901760
    %473 = vmatpush.msra.mxu0 %v472
    %v474 = vand.u32 %v31, 4294901760
    %v475 = vsub.f32 %v31, %v474
    %v476 = vand.u32 %v475, 4294901760
    %v477 = vsub.f32 %v475, %v476
    %v478 = vand.u32 %v477, 4294901760
    %479 = vmatpush.msra.mxu0 %v478
    %v480 = vand.u32 %v29, 4294901760
    %v481 = vsub.f32 %v29, %v480
    %v482 = vand.u32 %v481, 4294901760
    %v483 = vsub.f32 %v481, %v482
    %v484 = vand.u32 %v483, 4294901760
    %485 = vmatpush.msra.mxu0 %v484
    %v486 = vand.u32 %v27, 4294901760
    %v487 = vsub.f32 %v27, %v486
    %v488 = vand.u32 %v487, 4294901760
    %v489 = vsub.f32 %v487, %v488
    %v490 = vand.u32 %v489, 4294901760
    %491 = vmatpush.msra.mxu0 %v490
    %v492 = vand.u32 %v25, 4294901760
    %v493 = vsub.f32 %v25, %v492
    %v494 = vand.u32 %v493, 4294901760
    %v495 = vsub.f32 %v493, %v494
    %v496 = vand.u32 %v495, 4294901760
    %497 = vmatpush.msra.mxu0 %v496
    %v498 = vand.u32 %v23, 4294901760
    %v499 = vsub.f32 %v23, %v498
    %v500 = vand.u32 %v499, 4294901760
    %v501 = vsub.f32 %v499, %v500
    %v502 = vand.u32 %v501, 4294901760
    %503 = vmatpush.msra.mxu0 %v502
    %v504 = vand.u32 %v21, 4294901760
    %v505 = vsub.f32 %v21, %v504
    %v506 = vand.u32 %v505, 4294901760
    %v507 = vsub.f32 %v505, %v506
    %v508 = vand.u32 %v507, 4294901760
    %509 = vmatpush.msra.mxu0 %v508
    %v510 = vand.u32 %v19, 4294901760
    %v511 = vsub.f32 %v19, %v510
    %v512 = vand.u32 %v511, 4294901760
    %v513 = vsub.f32 %v511, %v512
    %v514 = vand.u32 %v513, 4294901760
    %515 = vmatpush.msra.mxu0 %v514
    %v516 = vand.u32 %v17, 4294901760
    %v517 = vsub.f32 %v17, %v516
    %v518 = vand.u32 %v517, 4294901760
    %v519 = vsub.f32 %v517, %v518
    %v520 = vand.u32 %v519, 4294901760
    %521 = vmatpush.msra.mxu0 %v520
    %v522 = vand.u32 %v15, 4294901760
    %v523 = vsub.f32 %v15, %v522
    %v524 = vand.u32 %v523, 4294901760
    %v525 = vsub.f32 %v523, %v524
    %v526 = vand.u32 %v525, 4294901760
    %527 = vmatpush.msra.mxu0 %v526
    %v528 = vand.u32 %v44, 4294901760
    %529 = vmatmul.f32.gmra.mxu0 %v528
    %v530 = vpop.f32.mrf.mxu0
    %v531 = vadd.f32 %v432, %v530
    %v532 = vand.u32 %v47, 4294901760
    %533 = vmatmul.f32.gmra.mxu0 %v532
    %v534 = vpop.f32.mrf.mxu0
    %v535 = vadd.f32 %v440, %v534
    %536 = vdwg.mxu0
    %537 = vmatpush.msra.mxu0 0.0
    %538 = vmatpush.msra.mxu0 0.0
    %v539 = vand.u32 %v41, 4294901760
    %v540 = vsub.f32 %v41, %v539
    %541 = vmatpush.msra.mxu0 %v540
    %v542 = vand.u32 %v39, 4294901760
    %v543 = vsub.f32 %v39, %v542
    %544 = vmatpush.msra.mxu0 %v543
    %v545 = vand.u32 %v37, 4294901760
    %v546 = vsub.f32 %v37, %v545
    %547 = vmatpush.msra.mxu0 %v546
    %v548 = vand.u32 %v35, 4294901760
    %v549 = vsub.f32 %v35, %v548
    %550 = vmatpush.msra.mxu0 %v549
    %v551 = vand.u32 %v33, 4294901760
    %v552 = vsub.f32 %v33, %v551
    %553 = vmatpush.msra.mxu0 %v552
    %v554 = vand.u32 %v31, 4294901760
    %v555 = vsub.f32 %v31, %v554
    %556 = vmatpush.msra.mxu0 %v555
    %v557 = vand.u32 %v29, 4294901760
    %v558 = vsub.f32 %v29, %v557
    %559 = vmatpush.msra.mxu0 %v558
    %v560 = vand.u32 %v27, 4294901760
    %v561 = vsub.f32 %v27, %v560
    %562 = vmatpush.msra.mxu0 %v561
    %v563 = vand.u32 %v25, 4294901760
    %v564 = vsub.f32 %v25, %v563
    %565 = vmatpush.msra.mxu0 %v564
    %v566 = vand.u32 %v23, 4294901760
    %v567 = vsub.f32 %v23, %v566
    %568 = vmatpush.msra.mxu0 %v567
    %v569 = vand.u32 %v21, 4294901760
    %v570 = vsub.f32 %v21, %v569
    %571 = vmatpush.msra.mxu0 %v570
    %v572 = vand.u32 %v19, 4294901760
    %v573 = vsub.f32 %v19, %v572
    %574 = vmatpush.msra.mxu0 %v573
    %v575 = vand.u32 %v17, 4294901760
    %v576 = vsub.f32 %v17, %v575
    %577 = vmatpush.msra.mxu0 %v576
    %v578 = vand.u32 %v15, 4294901760
    %v579 = vsub.f32 %v15, %v578
    %580 = vmatpush.msra.mxu0 %v579
    %v581 = vand.u32 %v44, 4294901760
    %v582 = vsub.f32 %v44, %v581
    %583 = vmatmul.f32.gmra.mxu0 %v582
    %v584 = vpop.f32.mrf.mxu0
    %v585 = vadd.f32 %v531, %v584
    %v586 = vand.u32 %v47, 4294901760
    %v587 = vsub.f32 %v47, %v586
    %588 = vmatmul.f32.gmra.mxu0 %v587
    %v589 = vpop.f32.mrf.mxu0
    %v590 = vadd.f32 %v535, %v589
    %591 = vdwg.mxu0
    %592 = vmatpush.msra.mxu0 0.0
    %593 = vmatpush.msra.mxu0 0.0
    %v594 = vand.u32 %v41, 4294901760
    %595 = vmatpush.msra.mxu0 %v594
    %v596 = vand.u32 %v39, 4294901760
    %597 = vmatpush.msra.mxu0 %v596
    %v598 = vand.u32 %v37, 4294901760
    %599 = vmatpush.msra.mxu0 %v598
    %v600 = vand.u32 %v35, 4294901760
    %601 = vmatpush.msra.mxu0 %v600
    %v602 = vand.u32 %v33, 4294901760
    %603 = vmatpush.msra.mxu0 %v602
    %v604 = vand.u32 %v31, 4294901760
    %605 = vmatpush.msra.mxu0 %v604
    %v606 = vand.u32 %v29, 4294901760
    %607 = vmatpush.msra.mxu0 %v606
    %v608 = vand.u32 %v27, 4294901760
    %609 = vmatpush.msra.mxu0 %v608
    %v610 = vand.u32 %v25, 4294901760
    %611 = vmatpush.msra.mxu0 %v610
    %v612 = vand.u32 %v23, 4294901760
    %613 = vmatpush.msra.mxu0 %v612
    %v614 = vand.u32 %v21, 4294901760
    %615 = vmatpush.msra.mxu0 %v614
    %v616 = vand.u32 %v19, 4294901760
    %617 = vmatpush.msra.mxu0 %v616
    %v618 = vand.u32 %v17, 4294901760
    %619 = vmatpush.msra.mxu0 %v618
    %v620 = vand.u32 %v15, 4294901760
    %621 = vmatpush.msra.mxu0 %v620
    %v622 = vand.u32 %v44, 4294901760
    %v623 = vsub.f32 %v44, %v622
    %v624 = vand.u32 %v623, 4294901760
    %625 = vmatmul.f32.gmra.mxu0 %v624
    %v626 = vpop.f32.mrf.mxu0
    %v627 = vadd.f32 %v585, %v626
    %v628 = vand.u32 %v47, 4294901760
    %v629 = vsub.f32 %v47, %v628
    %v630 = vand.u32 %v629, 4294901760
    %631 = vmatmul.f32.gmra.mxu0 %v630
    %v632 = vpop.f32.mrf.mxu0
    %v633 = vadd.f32 %v590, %v632
    %634 = vdwg.mxu0
    %635 = vmatpush.msra.mxu0 0.0
    %636 = vmatpush.msra.mxu0 0.0
    %v637 = vand.u32 %v41, 4294901760
    %v638 = vsub.f32 %v41, %v637
    %v639 = vand.u32 %v638, 4294901760
    %640 = vmatpush.msra.mxu0 %v639
    %v641 = vand.u32 %v39, 4294901760
    %v642 = vsub.f32 %v39, %v641
    %v643 = vand.u32 %v642, 4294901760
    %644 = vmatpush.msra.mxu0 %v643
    %v645 = vand.u32 %v37, 4294901760
    %v646 = vsub.f32 %v37, %v645
    %v647 = vand.u32 %v646, 4294901760
    %648 = vmatpush.msra.mxu0 %v647
    %v649 = vand.u32 %v35, 4294901760
    %v650 = vsub.f32 %v35, %v649
    %v651 = vand.u32 %v650, 4294901760
    %652 = vmatpush.msra.mxu0 %v651
    %v653 = vand.u32 %v33, 4294901760
    %v654 = vsub.f32 %v33, %v653
    %v655 = vand.u32 %v654, 4294901760
    %656 = vmatpush.msra.mxu0 %v655
    %v657 = vand.u32 %v31, 4294901760
    %v658 = vsub.f32 %v31, %v657
    %v659 = vand.u32 %v658, 4294901760
    %660 = vmatpush.msra.mxu0 %v659
    %v661 = vand.u32 %v29, 4294901760
    %v662 = vsub.f32 %v29, %v661
    %v663 = vand.u32 %v662, 4294901760
    %664 = vmatpush.msra.mxu0 %v663
    %v665 = vand.u32 %v27, 4294901760
    %v666 = vsub.f32 %v27, %v665
    %v667 = vand.u32 %v666, 4294901760
    %668 = vmatpush.msra.mxu0 %v667
    %v669 = vand.u32 %v25, 4294901760
    %v670 = vsub.f32 %v25, %v669
    %v671 = vand.u32 %v670, 4294901760
    %672 = vmatpush.msra.mxu0 %v671
    %v673 = vand.u32 %v23, 4294901760
    %v674 = vsub.f32 %v23, %v673
    %v675 = vand.u32 %v674, 4294901760
    %676 = vmatpush.msra.mxu0 %v675
    %v677 = vand.u32 %v21, 4294901760
    %v678 = vsub.f32 %v21, %v677
    %v679 = vand.u32 %v678, 4294901760
    %680 = vmatpush.msra.mxu0 %v679
    %v681 = vand.u32 %v19, 4294901760
    %v682 = vsub.f32 %v19, %v681
    %v683 = vand.u32 %v682, 4294901760
    %684 = vmatpush.msra.mxu0 %v683
    %v685 = vand.u32 %v17, 4294901760
    %v686 = vsub.f32 %v17, %v685
    %v687 = vand.u32 %v686, 4294901760
    %688 = vmatpush.msra.mxu0 %v687
    %v689 = vand.u32 %v15, 4294901760
    %v690 = vsub.f32 %v15, %v689
    %v691 = vand.u32 %v690, 4294901760
    %692 = vmatpush.msra.mxu0 %v691
    %v693 = vand.u32 %v44, 4294901760
    %694 = vmatmul.f32.gmra.mxu0 %v693
    %v695 = vpop.f32.mrf.mxu0
    %v696 = vadd.f32 %v627, %v695
    %v697 = vand.u32 %v47, 4294901760
    %698 = vmatmul.f32.gmra.mxu0 %v697
    %v699 = vpop.f32.mrf.mxu0
    %v700 = vadd.f32 %v633, %v699
    %701 = vdwg.mxu0
    %702 = vmatpush.msra.mxu0 0.0
    %703 = vmatpush.msra.mxu0 0.0
    %v704 = vand.u32 %v41, 4294901760
    %705 = vmatpush.msra.mxu0 %v704
    %v706 = vand.u32 %v39, 4294901760
    %707 = vmatpush.msra.mxu0 %v706
    %v708 = vand.u32 %v37, 4294901760
    %709 = vmatpush.msra.mxu0 %v708
    %v710 = vand.u32 %v35, 4294901760
    %711 = vmatpush.msra.mxu0 %v710
    %v712 = vand.u32 %v33, 4294901760
    %713 = vmatpush.msra.mxu0 %v712
    %v714 = vand.u32 %v31, 4294901760
    %715 = vmatpush.msra.mxu0 %v714
    %v716 = vand.u32 %v29, 4294901760
    %717 = vmatpush.msra.mxu0 %v716
    %v718 = vand.u32 %v27, 4294901760
    %719 = vmatpush.msra.mxu0 %v718
    %v720 = vand.u32 %v25, 4294901760
    %721 = vmatpush.msra.mxu0 %v720
    %v722 = vand.u32 %v23, 4294901760
    %723 = vmatpush.msra.mxu0 %v722
    %v724 = vand.u32 %v21, 4294901760
    %725 = vmatpush.msra.mxu0 %v724
    %v726 = vand.u32 %v19, 4294901760
    %727 = vmatpush.msra.mxu0 %v726
    %v728 = vand.u32 %v17, 4294901760
    %729 = vmatpush.msra.mxu0 %v728
    %v730 = vand.u32 %v15, 4294901760
    %731 = vmatpush.msra.mxu0 %v730
    %v732 = vand.u32 %v44, 4294901760
    %733 = vmatmul.f32.gmra.mxu0 %v732
    %v734 = vpop.f32.mrf.mxu0
    %v735 = vadd.f32 %v696, %v734
    %v736 = vand.u32 %v47, 4294901760
    %737 = vmatmul.f32.gmra.mxu0 %v736
    %v738 = vpop.f32.mrf.mxu0
    %v739 = vadd.f32 %v700, %v738
    %740 = vdwg.mxu0
    %v741 = vsub.f32 0.0, %v389
    %v742 = vsub.f32 0.0, %v735
    %v743 = vsub.f32 0.0, %v393
    %v744 = vsub.f32 0.0, %v739
    %v745 = vmul.f32 %v741, 1.442695
    %v746 = vpow.pop %v745
    %v747 = vmul.f32 %v742, 1.442695
    %v748 = vpow.pop %v747
    %v749 = vmul.f32 %v743, 1.442695
    %v750 = vpow.pop %v749
    %v751 = vmul.f32 %v744, 1.442695
    %v752 = vpow.pop %v751
    %v753 = vadd.f32 %v746, 1.0
    %v754 = vadd.f32 %v748, 1.0
    %v755 = vadd.f32 %v750, 1.0
    %v756 = vadd.f32 %v752, 1.0
    %v757 = vrcp.pop %v753
    %v758 = vmul.f32 %v753, %v757
    %v759 = vsub.f32 1.0, %v758
    %v760 = vmul.f32 %v757, %v759
    %v761 = vadd.f32 %v757, %v760
    %vm762 = vweird.f32 %v753
    %vm763 = vweird.f32 %v757
    %vm764 = vmor %vm762, %vm763
    %v765 = vsel %vm764, %v757, %v761
    %v766 = vand.u32 2147483647, %v753
    %vm767 = vcmp.eq.f32.partialorder %v766, 8.507059e+37
    %v768 = vand.u32 %v753, 2147483648
    %v769 = vor.u32 1.1754944e-38, %v768
    %v770 = vsel %vm767, %v769, %v765
    %v771 = vmul.f32 1.0, %v770
    %v772 = vrcp.pop %v754
    %v773 = vmul.f32 %v754, %v772
    %v774 = vsub.f32 1.0, %v773
    %v775 = vmul.f32 %v772, %v774
    %v776 = vadd.f32 %v772, %v775
    %vm777 = vweird.f32 %v754
    %vm778 = vweird.f32 %v772
    %vm779 = vmor %vm777, %vm778
    %v780 = vsel %vm779, %v772, %v776
    %v781 = vand.u32 2147483647, %v754
    %vm782 = vcmp.eq.f32.partialorder %v781, 8.507059e+37
    %v783 = vand.u32 %v754, 2147483648
    %v784 = vor.u32 1.1754944e-38, %v783
    %v785 = vsel %vm782, %v784, %v780
    %v786 = vmul.f32 1.0, %v785
    %v787 = vrcp.pop %v755
    %v788 = vmul.f32 %v755, %v787
    %v789 = vsub.f32 1.0, %v788
    %v790 = vmul.f32 %v787, %v789
    %v791 = vadd.f32 %v787, %v790
    %vm792 = vweird.f32 %v755
    %vm793 = vweird.f32 %v787
    %vm794 = vmor %vm792, %vm793
    %v795 = vsel %vm794, %v787, %v791
    %v796 = vand.u32 2147483647, %v755
    %vm797 = vcmp.eq.f32.partialorder %v796, 8.507059e+37
    %v798 = vand.u32 %v755, 2147483648
    %v799 = vor.u32 1.1754944e-38, %v798
    %v800 = vsel %vm797, %v799, %v795
    %v801 = vmul.f32 1.0, %v800
    %v802 = vrcp.pop %v756
    %v803 = vmul.f32 %v756, %v802
    %v804 = vsub.f32 1.0, %v803
    %v805 = vmul.f32 %v802, %v804
    %v806 = vadd.f32 %v802, %v805
    %vm807 = vweird.f32 %v756
    %vm808 = vweird.f32 %v802
    %vm809 = vmor %vm807, %vm808
    %v810 = vsel %vm809, %v802, %v806
    %v811 = vand.u32 2147483647, %v756
    %vm812 = vcmp.eq.f32.partialorder %v811, 8.507059e+37
    %v813 = vand.u32 %v756, 2147483648
    %v814 = vor.u32 1.1754944e-38, %v813
    %v815 = vsel %vm812, %v814, %v810
    %v816 = vmul.f32 1.0, %v815
    %819 = vrot.lane.b32.xlu0 %v389, 56
    %v820 = vpop.permute.xlu0 %819
    %821 = vrot.lane.b32.xlu0 %v393, 56
    %v822 = vpop.permute.xlu0 %821
    %v825 = vadd.f32 %v389, %v820
    %v826 = vadd.f32 %v393, %v822
    %831 = vrot.lane.b32.xlu0 %v771, 72
    %v832 = vpop.permute.xlu0 %831
    %833 = vrot.lane.b32.xlu0 %v786, 72
    %v834 = vpop.permute.xlu0 %833
    %835 = vrot.lane.b32.xlu0 %v801, 72
    %v836 = vpop.permute.xlu0 %835
    %837 = vrot.lane.b32.xlu0 %v816, 72
    %v838 = vpop.permute.xlu0 %837
    %vm839 = vcmask 588800
    %v840 = vsel %vm839, %v832, %v834
    %v841 = vsel %vm839, %v836, %v838
    %v844 = vmul.f32 %v825, %v840
    %v845 = vmul.f32 %v826, %v841
    %848 = vrot.lane.b32.xlu0 %v844, 72
    %v849 = vpop.permute.xlu0 %848
    %850 = vrot.lane.b32.xlu0 %v845, 72
    %v851 = vpop.permute.xlu0 %850
    %vm854 = vcmask 457728
    %855 = vst.msk [vmem:[#allocation2] sm:$0xff] %vm854, %v849
    %856 = vst.msk [vmem:[#allocation2 + $0x8] sm:$0xff] %vm854, %v851
    // Predicated region
    $region10: #{tpu_custom_call.1} parent=1 // pred_check
      _
    $region11: #{tpu_custom_call.1} parent=1 // pred_check_branch
      %858 = sbr.rel (0) target = $region13
    $region12: #{tpu_custom_call.1} parent=1 // pred_region
      %860 = vsyncadd [#allocation3], 0
      %s861 = sshll.u32 [#allocation2], 4
      %s862 = int_to_ptr.vmem [resolvable:$true] %s861
      %s863 = sshll.u32 %s2, 4
      %s864 = int_to_ptr.hbm [resolvable:$true] %s863
      %869 = dma.vmem_to_hbm [thread:$0]  %s862, 256, %s864, [#allocation3], 128, 128, 8
    $region13: #{tpu_custom_call.1} parent=1 // pred_fallthru
      _
    // Predicated region
    $region14: #{tpu_custom_call.1} parent=1 // pred_check
      _
    $region15: #{tpu_custom_call.1} parent=1 // pred_check_branch
      %871 = sbr.rel (0) target = $region17
    $region16: #{tpu_custom_call.1} parent=1 // pred_region
      %873 = dma.done [#allocation3], 256
    $region17: #{tpu_custom_call.1} parent=1 // pred_fallthru
      _
    %874 = vsyncpa [#allocation3], 1

</llo_original>
